<compile_context>
chip_gen: v6e
topology: v6e:2x2x1
jax: 0.10.0
libtpu: 0.0.40
codegen_flags: <defaults>
</compile_context>

<pallas_src>
import jax
import jax.numpy as jnp
from jax.experimental import pallas as pl
from jax.experimental.pallas import tpu as pltpu


def _pick_tile(total, align, cap):
    """Largest multiple of `align` that evenly divides `total` and is <= cap.

    Falls back to the full extent when `total` is not a multiple of `align`
    (a full-extent block dimension is always legal for a BlockSpec).  The
    caller bounds the *other* tile dimension by the actual value returned
    here, so the fallback cannot blow past the VMEM budget.
    """
    if total % align != 0:
        return total
    best = align
    t = align
    upper = min(cap, total)
    while t <= upper:
        if total % t == 0:
            best = t
        t += align
    return best


def skff_pool_kernel(*refs):
    """Pooled branch-sum.

    refs = (x_0, ..., x_{height-1}, pool)
      x_h:  (rt, lt)      one row/spatial tile of branch h (packed B*C rows)
      pool: (1, rt, 1) f32 resident accumulator, indexed by (split, row-block)
    Grid: (ns, n_row_blocks, n_lane_blocks_per_split); last axis is the
    spatial reduction.
    """
    x_refs, pool_ref = refs[:-1], refs[-1]
    li = pl.program_id(2)

    # Branch sum for this tile on the VPU (f32), then one lane reduce.
    u = x_refs[0][...].astype(jnp.float32)
    for xr in x_refs[1:]:
        u = u + xr[...].astype(jnp.float32)
    part = jnp.sum(u, axis=-1, keepdims=True)           # (rt, 1)

    @pl.when(li == 0)
    def _init():
        pool_ref[0] = part

    @pl.when(li != 0)
    def _acc():
        pool_ref[0] += part


def skff_rescale_kernel(*refs):
    """Attention-weighted rescale of every branch (HBM-bandwidth bound).

    refs = (att, x_0, ..., x_{height-1}, out_0, ..., out_{height-1})
      att: (height, rt, 1) f32 attention weights per (branch, row)
      x_h / out_h: (rt, lt)   dense (>=8 sublanes, multiple-of-128 lanes) tile
    """
    att_ref = refs[0]
    height = att_ref.shape[0]
    x_refs = refs[1:1 + height]
    o_refs = refs[1 + height:]
    for h in range(height):
        a = att_ref[h]                                   # (rt, 1) f32
        # Multiply in f32, cast only at the store (keeps full attention
        # precision for bf16 inputs; the extra VALU work is hidden by DMA).
        o_refs[h][...] = (x_refs[h][...].astype(jnp.float32) * a).astype(
            o_refs[h].dtype)


def skff_forward(inp_feats, w_du, prelu_w, w_fcs, *,
                 att_block_bytes=1 << 20, rescale_block_bytes=None):
    """SKFF forward.  inp_feats: list of `height` arrays, each (B, C, H, W)."""
    height = len(inp_feats)
    B, C, H, W = inp_feats[0].shape
    dtype = inp_feats[0].dtype
    itemsize = jnp.dtype(dtype).itemsize
    hw = H * W
    rows = B * C
    # dtype-dependent sublane packing: 8 rows for f32, 16 for bf16, 32 for i8.
    sub = max(8, 32 // itemsize)

    if rescale_block_bytes is None:
        # Keep total pass-2 VMEM (2 buffers x (height in + height out) x block)
        # around ~24 MiB regardless of `height`, with at least 512 KiB blocks.
        rescale_block_bytes = max(512 * 1024, min(2 << 20, (24 << 20) // (4 * height)))

    # Free reshapes (no data movement): (B, C, H, W) -> (B*C, H*W).
    xs = [x.reshape(rows, hw) for x in inp_feats]

    # ----------------- pass 1: pooled branch-sum per (batch, channel) ------
    lt1 = _pick_tile(hw, 128, max(128, att_block_bytes // (sub * itemsize)))
    rt1 = _pick_tile(rows, sub, max(sub, att_block_bytes // (lt1 * itemsize)))
    # TODO(synk): if hw % 128 != 0 AND rows % sub != 0 AND rows*hw is huge, the
    # full-extent fallback of _pick_tile could exceed VMEM; pad hw upstream.
    n_r1 = rows // rt1
    n_l1 = hw // lt1
    # v7x: when the row axis alone can't feed both TensorCores, split the
    # spatial reduction in two and combine the partial sums in XLA below.
    ns = 2 if (n_r1 % 2 == 1 and n_l1 % 2 == 0) else 1
    n_lp = n_l1 // ns

    vmem1 = 2 * height * rt1 * lt1 * itemsize + 2 * rt1 * 4 + (2 << 20)
    partial = pl.pallas_call(
        skff_pool_kernel,
        out_shape=jax.ShapeDtypeStruct((ns, rows, 1), jnp.float32),
        grid_spec=pltpu.PrefetchScalarGridSpec(
            num_scalar_prefetch=0,
            grid=(ns, n_r1, n_lp),
            in_specs=[pl.BlockSpec((rt1, lt1),
                                   lambda s, r, l: (r, s * n_lp + l))] * height,
            out_specs=pl.BlockSpec((1, rt1, 1), lambda s, r, l: (s, r, 0)),
        ),
        compiler_params=pltpu.CompilerParams(
            dimension_semantics=("parallel", "parallel", "arbitrary"),
            vmem_limit_bytes=min(max(vmem1, 16 << 20), 48 << 20)),
    )(*xs)

    # -------- tiny epilogue in plain JAX: conv_du -> PReLU -> fcs -> softmax -
    pooled = jnp.sum(partial, axis=0)[:, 0].reshape(B, C)        # branch-sum pool
    s_feat = pooled * (1.0 / hw)                                  # (B, C) mean
    z = s_feat @ jnp.asarray(w_du, jnp.float32).T                 # (B, d)
    slope = jnp.asarray(prelu_w, jnp.float32)
    z = jnp.where(z >= 0.0, z, slope * z)                         # PReLU
    wfcs = jnp.stack([jnp.asarray(w, jnp.float32) for w in w_fcs], axis=0)
    logits = jnp.einsum('bd,hcd->hbc', z, wfcs)                   # (height, B, C)
    att = jax.nn.softmax(logits, axis=0)                          # exact softmax
    att = att.reshape(height, rows, 1)                            # f32

    # ----------------- pass 2: attention-weighted rescale ------------------
    lt2 = _pick_tile(hw, 128, max(128, rescale_block_bytes // (sub * itemsize)))
    rt2 = _pick_tile(rows, sub, max(sub, rescale_block_bytes // (lt2 * itemsize)))
    blk = rt2 * lt2 * itemsize
    vmem2 = 4 * height * blk + 2 * height * rt2 * 4 + (2 << 20)

    outs = pl.pallas_call(
        skff_rescale_kernel,
        out_shape=tuple(jax.ShapeDtypeStruct((rows, hw), dtype)
                        for _ in range(height)),
        grid_spec=pltpu.PrefetchScalarGridSpec(
            num_scalar_prefetch=0,
            grid=(rows // rt2, hw // lt2),
            in_specs=[pl.BlockSpec((height, rt2, 1), lambda r, l: (0, r, 0))]
                     + [pl.BlockSpec((rt2, lt2), lambda r, l: (r, l))] * height,
            out_specs=tuple(pl.BlockSpec((rt2, lt2), lambda r, l: (r, l))
                            for _ in range(height)),
        ),
        compiler_params=pltpu.CompilerParams(
            dimension_semantics=("parallel", "parallel"),
            vmem_limit_bytes=min(max(vmem2, 16 << 20), 48 << 20)),
    )(att, *xs)

    # Free reshapes back to NCHW.
    return [o.reshape(B, C, H, W) for o in outs]


def skff_ref(inp_feats, w_du, prelu_w, w_fcs):
    """Pure-JAX reference mirroring the PyTorch forward."""
    x = jnp.stack(inp_feats, axis=1)                       # (B, ht, C, H, W)
    u = jnp.sum(x, axis=1)                                 # (B, C, H, W)
    s = jnp.mean(u, axis=(2, 3))                           # (B, C)
    z = s @ w_du.T                                         # (B, d)
    z = jnp.where(z >= 0.0, z, prelu_w * z)
    att = jnp.stack([z @ wf.T for wf in w_fcs], axis=1)    # (B, ht, C)
    att = jax.nn.softmax(att, axis=1)
    v = x * att[:, :, :, None, None]
    return [v[:, i] for i in range(x.shape[1])]


if __name__ == "__main__":
    key = jax.random.PRNGKey(0)

    def make_case(k, B, C, H, W, height, reduction):
        d = max(int(C / reduction), 4)
        keys = jax.random.split(k, 2 + height)
        # Deterministic "kaiming-normal"-style init (std = sqrt(2 / fan_in)).
        w_du = jax.random.normal(keys[0], (d, C), jnp.float32) * jnp.sqrt(2.0 / C)
        w_fcs = [jax.random.normal(keys[1 + i], (C, d), jnp.float32)
                 * jnp.sqrt(2.0 / d) for i in range(height)]
        prelu_w = jnp.float32(0.25)   # nn.PReLU() default init
        xk = jax.random.split(keys[-1], height)
        inp_feats = [jax.random.normal(xk[i], (B, C, H, W), jnp.float32)
                     for i in range(height)]
        return inp_feats, w_du, prelu_w, w_fcs

    fwd = jax.jit(skff_forward,
                  static_argnames=("att_block_bytes", "rescale_block_bytes"))

    k1, k2 = jax.random.split(key)

    # Case 1: SKFF(in_channels=4, height=3, reduction=4) at small shapes.
    inp_feats, w_du, prelu_w, w_fcs = make_case(k1, 2, 4, 16, 16, 3, 4)
    outs = fwd(inp_feats, w_du, prelu_w, w_fcs,
               att_block_bytes=1 << 20, rescale_block_bytes=2 << 20)
    outs = [jax.block_until_ready(o) for o in outs]
    refs = skff_ref(inp_feats, w_du, prelu_w, w_fcs)
    for o, r in zip(outs, refs):
        assert o.shape == (2, 4, 16, 16)
        assert jnp.max(jnp.abs(o - r)) < 1e-4

    # Case 2: tiny block-byte targets force multi-tile grids and the 2-way
    # split of the pass-1 spatial reduction, so those code paths are covered.
    inp_feats, w_du, prelu_w, w_fcs = make_case(k2, 1, 8, 32, 32, 3, 4)
    outs = fwd(inp_feats, w_du, prelu_w, w_fcs,
               att_block_bytes=8 * 1024, rescale_block_bytes=8 * 1024)
    outs = [jax.block_until_ready(o) for o in outs]
    refs = skff_ref(inp_feats, w_du, prelu_w, w_fcs)
    for o, r in zip(outs, refs):
        assert o.shape == (1, 8, 32, 32)
        assert jnp.max(jnp.abs(o - r)) < 1e-4

    print("KERNEL_OK")
</pallas_src>

<mosaic_0001>
module attributes {stable_mosaic.version = 11 : i64} {
  func.func @skff_pool_kernel(%arg0: i32, %arg1: i32, %arg2: i32, %arg3: memref<8x256xf32, #tpu.memory_space<vmem>>, %arg4: memref<8x256xf32, #tpu.memory_space<vmem>>, %arg5: memref<8x256xf32, #tpu.memory_space<vmem>>, %arg6: memref<1x8x1xf32, #tpu.memory_space<vmem>>) attributes {dimension_semantics = [#tpu.dimension_semantics<parallel>, #tpu.dimension_semantics<parallel>, #tpu.dimension_semantics<arbitrary>], iteration_bounds = array<i64: 1, 1, 1>, scalar_prefetch = 0 : i64, scratch_operands = 0 : i64, tpu.core_type = #tpu.core_type<tc>, window_params = [{transform_indices = @transform_0, window_bounds = array<i64: 8, 256>}, {transform_indices = @transform_1, window_bounds = array<i64: 8, 256>}, {transform_indices = @transform_2, window_bounds = array<i64: 8, 256>}, {transform_indices = @transform_3, window_bounds = array<i64: 1, 8, 1>}]} {
    %c0 = arith.constant 0 : index
    %c0_0 = arith.constant 0 : index
    %0 = vector.load %arg3[%c0, %c0_0] : memref<8x256xf32, #tpu.memory_space<vmem>>, vector<8x256xf32>
    %c0_1 = arith.constant 0 : index
    %c0_2 = arith.constant 0 : index
    %1 = vector.load %arg4[%c0_1, %c0_2] : memref<8x256xf32, #tpu.memory_space<vmem>>, vector<8x256xf32>
    %2 = arith.addf %0, %1 : vector<8x256xf32>
    %c0_3 = arith.constant 0 : index
    %c0_4 = arith.constant 0 : index
    %3 = vector.load %arg5[%c0_3, %c0_4] : memref<8x256xf32, #tpu.memory_space<vmem>>, vector<8x256xf32>
    %4 = arith.addf %2, %3 : vector<8x256xf32>
    %cst = arith.constant dense<0.000000e+00> : vector<8xf32>
    %5 = vector.multi_reduction <add>, %4, %cst [1] : vector<8x256xf32> to vector<8xf32>
    %6 = vector.shape_cast %5 : vector<8xf32> to vector<8x1xf32>
    %c0_i32 = arith.constant 0 : i32
    %7 = arith.cmpi eq, %arg2, %c0_i32 : i32
    %8 = arith.extui %7 : i1 to i32
    %c0_i32_5 = arith.constant 0 : i32
    %9 = arith.cmpi ne, %8, %c0_i32_5 : i32
    scf.if %9 {
      %c0_8 = arith.constant 0 : index
      %c0_9 = arith.constant 0 : index
      %c0_10 = arith.constant 0 : index
      %13 = vector.load %arg6[%c0_8, %c0_9, %c0_10] : memref<1x8x1xf32, #tpu.memory_space<vmem>>, vector<1x8x1xf32>
      %14 = vector.shape_cast %13 : vector<1x8x1xf32> to vector<8x1xf32>
      %15 = vector.shape_cast %6 : vector<8x1xf32> to vector<1x8x1xf32>
      tpu.vector_store %arg6[%c0_8, %c0_9, %c0_10], %15 {strides = array<i32>} : memref<1x8x1xf32, #tpu.memory_space<vmem>>, vector<1x8x1xf32>,
    } else {
    }
    %c0_i32_6 = arith.constant 0 : i32
    %10 = arith.cmpi ne, %arg2, %c0_i32_6 : i32
    %11 = arith.extui %10 : i1 to i32
    %c0_i32_7 = arith.constant 0 : i32
    %12 = arith.cmpi ne, %11, %c0_i32_7 : i32
    scf.if %12 {
      %c0_8 = arith.constant 0 : index
      %c0_9 = arith.constant 0 : index
      %c0_10 = arith.constant 0 : index
      %13 = vector.load %arg6[%c0_8, %c0_9, %c0_10] : memref<1x8x1xf32, #tpu.memory_space<vmem>>, vector<1x8x1xf32>
      %14 = vector.shape_cast %13 : vector<1x8x1xf32> to vector<8x1xf32>
      %15 = arith.addf %14, %6 : vector<8x1xf32>
      %c0_11 = arith.constant 0 : index
      %c0_12 = arith.constant 0 : index
      %c0_13 = arith.constant 0 : index
      %16 = vector.load %arg6[%c0_11, %c0_12, %c0_13] : memref<1x8x1xf32, #tpu.memory_space<vmem>>, vector<1x8x1xf32>
      %17 = vector.shape_cast %16 : vector<1x8x1xf32> to vector<8x1xf32>
      %18 = vector.shape_cast %15 : vector<8x1xf32> to vector<1x8x1xf32>
      tpu.vector_store %arg6[%c0_11, %c0_12, %c0_13], %18 {strides = array<i32>} : memref<1x8x1xf32, #tpu.memory_space<vmem>>, vector<1x8x1xf32>,
    } else {
    }
    return
  }
  func.func @transform_0(%arg0: i32, %arg1: i32, %arg2: i32) -> (i32, i32) {
    %c1_i32 = arith.constant 1 : i32
    %0 = arith.muli %arg0, %c1_i32 : i32
    %1 = arith.addi %0, %arg2 : i32
    %c0_i32 = arith.constant 0 : i32
    return %arg1, %1 : i32, i32
  }
  func.func @transform_1(%arg0: i32, %arg1: i32, %arg2: i32) -> (i32, i32) {
    %c1_i32 = arith.constant 1 : i32
    %0 = arith.muli %arg0, %c1_i32 : i32
    %1 = arith.addi %0, %arg2 : i32
    %c0_i32 = arith.constant 0 : i32
    return %arg1, %1 : i32, i32
  }
  func.func @transform_2(%arg0: i32, %arg1: i32, %arg2: i32) -> (i32, i32) {
    %c1_i32 = arith.constant 1 : i32
    %0 = arith.muli %arg0, %c1_i32 : i32
    %1 = arith.addi %0, %arg2 : i32
    %c0_i32 = arith.constant 0 : i32
    return %arg1, %1 : i32, i32
  }
  func.func @transform_3(%arg0: i32, %arg1: i32, %arg2: i32) -> (i32, i32, i32) {
    %c0_i32 = arith.constant 0 : i32
    %c0_i32_0 = arith.constant 0 : i32
    return %arg0, %arg1, %c0_i32 : i32, i32, i32
  }
}

module attributes {stable_mosaic.version = 11 : i64} {
  func.func @skff_rescale_kernel(%arg0: i32, %arg1: i32, %arg2: memref<3x8x1xf32, #tpu.memory_space<vmem>>, %arg3: memref<8x256xf32, #tpu.memory_space<vmem>>, %arg4: memref<8x256xf32, #tpu.memory_space<vmem>>, %arg5: memref<8x256xf32, #tpu.memory_space<vmem>>, %arg6: memref<8x256xf32, #tpu.memory_space<vmem>>, %arg7: memref<8x256xf32, #tpu.memory_space<vmem>>, %arg8: memref<8x256xf32, #tpu.memory_space<vmem>>) attributes {dimension_semantics = [#tpu.dimension_semantics<parallel>, #tpu.dimension_semantics<parallel>], iteration_bounds = array<i64: 1, 1>, scalar_prefetch = 0 : i64, scratch_operands = 0 : i64, tpu.core_type = #tpu.core_type<tc>, window_params = [{transform_indices = @transform_0, window_bounds = array<i64: 3, 8, 1>}, {transform_indices = @transform_1, window_bounds = array<i64: 8, 256>}, {transform_indices = @transform_2, window_bounds = array<i64: 8, 256>}, {transform_indices = @transform_3, window_bounds = array<i64: 8, 256>}, {transform_indices = @transform_4, window_bounds = array<i64: 8, 256>}, {transform_indices = @transform_5, window_bounds = array<i64: 8, 256>}, {transform_indices = @transform_6, window_bounds = array<i64: 8, 256>}]} {
    %c0 = arith.constant 0 : index
    %c0_0 = arith.constant 0 : index
    %c0_1 = arith.constant 0 : index
    %0 = vector.load %arg2[%c0, %c0_0, %c0_1] : memref<3x8x1xf32, #tpu.memory_space<vmem>>, vector<1x8x1xf32>
    %1 = vector.shape_cast %0 : vector<1x8x1xf32> to vector<8x1xf32>
    %c0_2 = arith.constant 0 : index
    %c0_3 = arith.constant 0 : index
    %2 = vector.load %arg3[%c0_2, %c0_3] : memref<8x256xf32, #tpu.memory_space<vmem>>, vector<8x256xf32>
    %3 = vector.broadcast %1 : vector<8x1xf32> to vector<8x256xf32>
    %4 = arith.mulf %2, %3 : vector<8x256xf32>
    %c0_4 = arith.constant 0 : index
    %c0_5 = arith.constant 0 : index
    %5 = vector.load %arg6[%c0_4, %c0_5] : memref<8x256xf32, #tpu.memory_space<vmem>>, vector<8x256xf32>
    tpu.vector_store %arg6[%c0_4, %c0_5], %4 {strides = array<i32>} : memref<8x256xf32, #tpu.memory_space<vmem>>, vector<8x256xf32>,
    %c1 = arith.constant 1 : index
    %c0_6 = arith.constant 0 : index
    %c0_7 = arith.constant 0 : index
    %6 = vector.load %arg2[%c1, %c0_6, %c0_7] : memref<3x8x1xf32, #tpu.memory_space<vmem>>, vector<1x8x1xf32>
    %7 = vector.shape_cast %6 : vector<1x8x1xf32> to vector<8x1xf32>
    %c0_8 = arith.constant 0 : index
    %c0_9 = arith.constant 0 : index
    %8 = vector.load %arg4[%c0_8, %c0_9] : memref<8x256xf32, #tpu.memory_space<vmem>>, vector<8x256xf32>
    %9 = vector.broadcast %7 : vector<8x1xf32> to vector<8x256xf32>
    %10 = arith.mulf %8, %9 : vector<8x256xf32>
    %c0_10 = arith.constant 0 : index
    %c0_11 = arith.constant 0 : index
    %11 = vector.load %arg7[%c0_10, %c0_11] : memref<8x256xf32, #tpu.memory_space<vmem>>, vector<8x256xf32>
    tpu.vector_store %arg7[%c0_10, %c0_11], %10 {strides = array<i32>} : memref<8x256xf32, #tpu.memory_space<vmem>>, vector<8x256xf32>,
    %c2 = arith.constant 2 : index
    %c0_12 = arith.constant 0 : index
    %c0_13 = arith.constant 0 : index
    %12 = vector.load %arg2[%c2, %c0_12, %c0_13] : memref<3x8x1xf32, #tpu.memory_space<vmem>>, vector<1x8x1xf32>
    %13 = vector.shape_cast %12 : vector<1x8x1xf32> to vector<8x1xf32>
    %c0_14 = arith.constant 0 : index
    %c0_15 = arith.constant 0 : index
    %14 = vector.load %arg5[%c0_14, %c0_15] : memref<8x256xf32, #tpu.memory_space<vmem>>, vector<8x256xf32>
    %15 = vector.broadcast %13 : vector<8x1xf32> to vector<8x256xf32>
    %16 = arith.mulf %14, %15 : vector<8x256xf32>
    %c0_16 = arith.constant 0 : index
    %c0_17 = arith.constant 0 : index
    %17 = vector.load %arg8[%c0_16, %c0_17] : memref<8x256xf32, #tpu.memory_space<vmem>>, vector<8x256xf32>
    tpu.vector_store %arg8[%c0_16, %c0_17], %16 {strides = array<i32>} : memref<8x256xf32, #tpu.memory_space<vmem>>, vector<8x256xf32>,
    return
  }
  func.func @transform_0(%arg0: i32, %arg1: i32) -> (i32, i32, i32) {
    %c0_i32 = arith.constant 0 : i32
    %c0_i32_0 = arith.constant 0 : i32
    %c0_i32_1 = arith.constant 0 : i32
    return %c0_i32, %arg0, %c0_i32_0 : i32, i32, i32
  }
  func.func @transform_1(%arg0: i32, %arg1: i32) -> (i32, i32) {
    %c0_i32 = arith.constant 0 : i32
    return %arg0, %arg1 : i32, i32
  }
  func.func @transform_2(%arg0: i32, %arg1: i32) -> (i32, i32) {
    %c0_i32 = arith.constant 0 : i32
    return %arg0, %arg1 : i32, i32
  }
  func.func @transform_3(%arg0: i32, %arg1: i32) -> (i32, i32) {
    %c0_i32 = arith.constant 0 : i32
    return %arg0, %arg1 : i32, i32
  }
  func.func @transform_4(%arg0: i32, %arg1: i32) -> (i32, i32) {
    %c0_i32 = arith.constant 0 : i32
    return %arg0, %arg1 : i32, i32
  }
  func.func @transform_5(%arg0: i32, %arg1: i32) -> (i32, i32) {
    %c0_i32 = arith.constant 0 : i32
    return %arg0, %arg1 : i32, i32
  }
  func.func @transform_6(%arg0: i32, %arg1: i32) -> (i32, i32) {
    %c0_i32 = arith.constant 0 : i32
    return %arg0, %arg1 : i32, i32
  }
}

</mosaic_0001>

<llo_original>
// kernel: skff_forward.2
$region0: #{skff_forward.2}
  #allocation0 [shape = 'u32[]', space=smem, size = 0x4, offset = 0x4, fixed_abs, tag = 'smem constant byte address 0x4 - core index']
  #allocation1 [shape = 'u32[144,128]{1,0:T(1,128)}', space=vmem, size = 0x12000, scoped, tag = 'internal scratch']
  %s0 = inlined_call_operand.vmem [shape: f32[8,256], index: 0, kind: input, shape index: {}]
  %s1 = inlined_call_operand.vmem [shape: f32[8,256], index: 1, kind: input, shape index: {}]
  %s2 = inlined_call_operand.vmem [shape: f32[8,256], index: 2, kind: input, shape index: {}]
  %s3 = inlined_call_operand.vmem [shape: f32[1,8,1], index: 3, kind: output, shape index: {}]
  %s4 = sld [smem:[#allocation0]]
  $region30: #{skff_forward.2} parent=0
    _
  %s6 = ssub.s32 1, %s4
  %s7 = scalar_select 0, %s6, %s4
  // Predicated region
  $region2: #{skff_forward.2} parent=0 // pred_check
    _
  $region3: #{skff_forward.2} parent=0 // pred_check_branch
    %9 = sbr.rel (0) target = $region5
  $region4: #{skff_forward.2} parent=0 // pred_region
    %s10 = sadd.s32 0, 0
    %s11 = smul.u32 2, %s10
    %p12 = scmp.lt.s32.totalorder %s11, 1
    %s13 = scalar_select %p12, %s11, 1
    %s14 = smul.addr %s13, 8
    %s15 = scalar_lea.vmem %s0, %s14
    %s16 = sadd.s32 0, 0
    %s17 = smul.u32 2, %s16
  $region5: #{skff_forward.2} parent=0 // pred_fallthru
    _
  // Predicated region
  $region6: #{skff_forward.2} parent=0 // pred_check
    _
  $region7: #{skff_forward.2} parent=0 // pred_check_branch
    %19 = sbr.rel (0) target = $region9
  $region8: #{skff_forward.2} parent=0 // pred_region
    %s20 = sadd.s32 0, 0
    %s21 = smul.u32 2, %s20
    %p22 = scmp.lt.s32.totalorder %s21, 1
    %s23 = scalar_select %p22, %s21, 1
    %s24 = smul.addr %s23, 8
    %s25 = scalar_lea.vmem %s1, %s24
    %s26 = sadd.s32 0, 0
    %s27 = smul.u32 2, %s26
  $region9: #{skff_forward.2} parent=0 // pred_fallthru
    _
  // Predicated region
  $region10: #{skff_forward.2} parent=0 // pred_check
    _
  $region11: #{skff_forward.2} parent=0 // pred_check_branch
    %29 = sbr.rel (0) target = $region13
  $region12: #{skff_forward.2} parent=0 // pred_region
    %s30 = sadd.s32 0, 0
    %s31 = smul.u32 2, %s30
    %p32 = scmp.lt.s32.totalorder %s31, 1
    %s33 = scalar_select %p32, %s31, 1
    %s34 = smul.addr %s33, 8
    %s35 = scalar_lea.vmem %s2, %s34
    %s36 = sadd.s32 0, 0
    %s37 = smul.u32 2, %s36
  $region13: #{skff_forward.2} parent=0 // pred_fallthru
    _
  %s38 = sadd.s32 0, 0
  %s39 = smul.u32 2, %s38
  %p40 = scmp.lt.s32.totalorder %s39, 1
  %s41 = scalar_select %p40, %s39, 1
  %s42 = smul.addr %s41, 8
  %s43 = scalar_lea.vmem %s0, %s42
  %s44 = sadd.s32 0, 0
  %s45 = smul.u32 2, %s44
  %p46 = scmp.lt.s32.totalorder %s45, 1
  %s47 = scalar_select %p46, %s45, 1
  %s48 = smul.addr %s47, 8
  %s49 = scalar_lea.vmem %s1, %s48
  %s50 = sadd.s32 0, 0
  %s51 = smul.u32 2, %s50
  %p52 = scmp.lt.s32.totalorder %s51, 1
  %s53 = scalar_select %p52, %s51, 1
  %s54 = smul.addr %s53, 8
  %s55 = scalar_lea.vmem %s2, %s54
  %s56 = sadd.s32 0, 0
  %s57 = smul.u32 2, %s56
  %p58 = scmp.lt.s32.totalorder %s57, 1
  %s59 = scalar_select %p58, %s57, 1
  %s60 = smul.addr %s59, 8
  %s61 = scalar_lea.vmem %s0, %s60
  %s62 = sadd.s32 0, 0
  %s63 = smul.u32 2, %s62
  %s64 = sadd.s32 0, 0
  %s65 = smul.u32 2, %s64
  %p66 = scmp.lt.s32.totalorder %s65, 1
  %s67 = scalar_select %p66, %s65, 1
  %s68 = smul.addr %s67, 8
  %s69 = scalar_lea.vmem %s1, %s68
  %s70 = sadd.s32 0, 0
  %s71 = smul.u32 2, %s70
  %s72 = sadd.s32 0, 0
  %s73 = smul.u32 2, %s72
  %p74 = scmp.lt.s32.totalorder %s73, 1
  %s75 = scalar_select %p74, %s73, 1
  %s76 = smul.addr %s75, 8
  %s77 = scalar_lea.vmem %s2, %s76
  %s78 = sadd.s32 0, 0
  %s79 = smul.u32 2, %s78
  %v80 = vld [vmem:[%s61] sm:$0xff]
  %v81 = vld [vmem:[%s61 + $0x8] sm:$0xff]
  %v82 = vld [vmem:[%s69] sm:$0xff]
  %v83 = vld [vmem:[%s69 + $0x8] sm:$0xff]
  %v84 = vadd.f32 %v80, %v82
  %v85 = vadd.f32 %v81, %v83
  %v86 = vld [vmem:[%s77] sm:$0xff]
  %v87 = vld [vmem:[%s77 + $0x8] sm:$0xff]
  %v88 = vadd.f32 %v84, %v86
  %v89 = vadd.f32 %v85, %v87
  %v90 = vadd.f32 %v88, %v89
  %91 = vadd.xlane.f32.xlu0 %v90
  %v92 = vpop.xlane.xlu0 %91
  %p93 = scmp.eq.s32.totalorder 0, 0
  // Predicated region
  $region14: #{skff_forward.2} parent=0 // pred_check
    %p94 = pneg %p93
  $region15: #{skff_forward.2} parent=0 // pred_check_branch
    %96 = sbr.rel (%p94) target = $region17
  $region16: #{skff_forward.2} parent=0 // pred_region
    %vm97 = vcmask 7168
    %98 = vst.msk [vmem:[%s3] sm:$0xff] %vm97, %v92
  $region17: #{skff_forward.2} parent=0 // pred_fallthru
    _
  %p99 = scmp.ne.s32.totalorder 0, 0
  // Predicated region
  $region18: #{skff_forward.2} parent=0 // pred_check
    %p100 = pneg %p99
  $region19: #{skff_forward.2} parent=0 // pred_check_branch
    %102 = sbr.rel (%p100) target = $region21
  $region20: #{skff_forward.2} parent=0 // pred_region
    %v103 = vld [vmem:[%s3] sm:$0xff]
    %v104 = vadd.f32 %v103, %v92
    %vm105 = vcmask 7168
    %106 = vst.msk [vmem:[%s3] sm:$0xff] %vm105, %v104
  $region21: #{skff_forward.2} parent=0 // pred_fallthru
    _
  // Predicated region
  $region22: #{skff_forward.2} parent=0 // pred_check
    _
  $region23: #{skff_forward.2} parent=0 // pred_check_branch
    %108 = sbr.rel (0) target = $region25
  $region24: #{skff_forward.2} parent=0 // pred_region
    _
  $region25: #{skff_forward.2} parent=0 // pred_fallthru
    _
  // Predicated region
  $region26: #{skff_forward.2} parent=0 // pred_check
    _
  $region27: #{skff_forward.2} parent=0 // pred_check_branch
    %110 = sbr.rel (0) target = $region29
  $region28: #{skff_forward.2} parent=0 // pred_region
    _
  $region29: #{skff_forward.2} parent=0 // pred_fallthru
    _

// kernel: skff_forward.3
$region0: #{skff_forward.3}
  #allocation0 [shape = 'u32[]', space=smem, size = 0x4, offset = 0x4, fixed_abs, tag = 'smem constant byte address 0x4 - core index']
  #allocation1 [shape = 'u32[144,128]{1,0:T(1,128)}', space=vmem, size = 0x12000, scoped, tag = 'internal scratch']
  %s0 = inlined_call_operand.vmem [shape: f32[3,8,1], index: 0, kind: input, shape index: {}]
  %s1 = inlined_call_operand.vmem [shape: f32[8,256], index: 1, kind: input, shape index: {}]
  %s2 = inlined_call_operand.vmem [shape: f32[8,256], index: 2, kind: input, shape index: {}]
  %s3 = inlined_call_operand.vmem [shape: f32[8,256], index: 3, kind: input, shape index: {}]
  %s4 = inlined_call_operand.vmem [shape: f32[8,256], index: 4, kind: output, shape index: {0}]
  %s5 = inlined_call_operand.vmem [shape: f32[8,256], index: 5, kind: output, shape index: {1}]
  %s6 = inlined_call_operand.vmem [shape: f32[8,256], index: 6, kind: output, shape index: {2}]
  %7 = xla_tuple %s4, %s5, %s6
  %s8 = sld [smem:[#allocation0]]
  $region42: #{skff_forward.3} parent=0
    _
  %s10 = ssub.s32 1, %s8
  %s11 = scalar_select 0, %s10, %s8
  // Predicated region
  $region2: #{skff_forward.3} parent=0 // pred_check
    _
  $region3: #{skff_forward.3} parent=0 // pred_check_branch
    %13 = sbr.rel (0) target = $region5
  $region4: #{skff_forward.3} parent=0 // pred_region
    _
  $region5: #{skff_forward.3} parent=0 // pred_fallthru
    _
  // Predicated region
  $region6: #{skff_forward.3} parent=0 // pred_check
    _
  $region7: #{skff_forward.3} parent=0 // pred_check_branch
    %15 = sbr.rel (0) target = $region9
  $region8: #{skff_forward.3} parent=0 // pred_region
    _
  $region9: #{skff_forward.3} parent=0 // pred_fallthru
    _
  // Predicated region
  $region10: #{skff_forward.3} parent=0 // pred_check
    _
  $region11: #{skff_forward.3} parent=0 // pred_check_branch
    %17 = sbr.rel (0) target = $region13
  $region12: #{skff_forward.3} parent=0 // pred_region
    _
  $region13: #{skff_forward.3} parent=0 // pred_fallthru
    _
  // Predicated region
  $region14: #{skff_forward.3} parent=0 // pred_check
    _
  $region15: #{skff_forward.3} parent=0 // pred_check_branch
    %19 = sbr.rel (0) target = $region17
  $region16: #{skff_forward.3} parent=0 // pred_region
    _
  $region17: #{skff_forward.3} parent=0 // pred_fallthru
    _
  %v20 = vld [vmem:[%s0] sm:$0xff]
  %v21 = vld [vmem:[%s1] sm:$0xff]
  %v22 = vld [vmem:[%s1 + $0x8] sm:$0xff]
  %24 = vset.pattern.permute.xlu0 0
  %25 = vperm.xlu0 %24, %v20
  %v26 = vpop.permute.xlu0 %25
  %v28 = vmul.f32 %v21, %v26
  %v29 = vmul.f32 %v22, %v26
  %30 = vst [vmem:[%s4] sm:$0xff] %v28
  %31 = vst [vmem:[%s4 + $0x8] sm:$0xff] %v29
  %s32 = scalar_lea.vmem %s0, 8
  %v33 = vld [vmem:[%s32] sm:$0xff]
  %v34 = vld [vmem:[%s2] sm:$0xff]
  %v35 = vld [vmem:[%s2 + $0x8] sm:$0xff]
  %37 = vset.pattern.permute.xlu0 0
  %38 = vperm.xlu0 %37, %v33
  %v39 = vpop.permute.xlu0 %38
  %v41 = vmul.f32 %v34, %v39
  %v42 = vmul.f32 %v35, %v39
  %43 = vst [vmem:[%s5] sm:$0xff] %v41
  %44 = vst [vmem:[%s5 + $0x8] sm:$0xff] %v42
  %s45 = scalar_lea.vmem %s0, 16
  %v46 = vld [vmem:[%s45] sm:$0xff]
  %v47 = vld [vmem:[%s3] sm:$0xff]
  %v48 = vld [vmem:[%s3 + $0x8] sm:$0xff]
  %50 = vset.pattern.permute.xlu0 0
  %51 = vperm.xlu0 %50, %v46
  %v52 = vpop.permute.xlu0 %51
  %v54 = vmul.f32 %v47, %v52
  %v55 = vmul.f32 %v48, %v52
  %56 = vst [vmem:[%s6] sm:$0xff] %v54
  %57 = vst [vmem:[%s6 + $0x8] sm:$0xff] %v55
  // Predicated region
  $region18: #{skff_forward.3} parent=0 // pred_check
    _
  $region19: #{skff_forward.3} parent=0 // pred_check_branch
    %59 = sbr.rel (0) target = $region21
  $region20: #{skff_forward.3} parent=0 // pred_region
    _
  $region21: #{skff_forward.3} parent=0 // pred_fallthru
    _
  // Predicated region
  $region22: #{skff_forward.3} parent=0 // pred_check
    _
  $region23: #{skff_forward.3} parent=0 // pred_check_branch
    %61 = sbr.rel (0) target = $region25
  $region24: #{skff_forward.3} parent=0 // pred_region
    _
  $region25: #{skff_forward.3} parent=0 // pred_fallthru
    _
  // Predicated region
  $region26: #{skff_forward.3} parent=0 // pred_check
    _
  $region27: #{skff_forward.3} parent=0 // pred_check_branch
    %63 = sbr.rel (0) target = $region29
  $region28: #{skff_forward.3} parent=0 // pred_region
    _
  $region29: #{skff_forward.3} parent=0 // pred_fallthru
    _
  // Predicated region
  $region30: #{skff_forward.3} parent=0 // pred_check
    _
  $region31: #{skff_forward.3} parent=0 // pred_check_branch
    %65 = sbr.rel (0) target = $region33
  $region32: #{skff_forward.3} parent=0 // pred_region
    _
  $region33: #{skff_forward.3} parent=0 // pred_fallthru
    _
  // Predicated region
  $region34: #{skff_forward.3} parent=0 // pred_check
    _
  $region35: #{skff_forward.3} parent=0 // pred_check_branch
    %67 = sbr.rel (0) target = $region37
  $region36: #{skff_forward.3} parent=0 // pred_region
    _
  $region37: #{skff_forward.3} parent=0 // pred_fallthru
    _
  // Predicated region
  $region38: #{skff_forward.3} parent=0 // pred_check
    _
  $region39: #{skff_forward.3} parent=0 // pred_check_branch
    %69 = sbr.rel (0) target = $region41
  $region40: #{skff_forward.3} parent=0 // pred_region
    _
  $region41: #{skff_forward.3} parent=0 // pred_fallthru
    _

</llo_original>
